<compile_context>
chip_gen: v5e
topology: v5e:2x2
jax: 0.10.0
libtpu: 0.0.40
codegen_flags: <defaults>
</compile_context>

<pallas_src>
import functools

import jax
import jax.numpy as jnp
from jax.experimental import pallas as pl
from jax.experimental.pallas import tpu as pltpu

BN_EPS = 1e-5  # cfg.BN.EPS default
_VMEM_LIMIT = 32 * 1024 * 1024


def _round_up(x, m):
    return (x + m - 1) // m * m


def _conv_stats_kernel(w_ref, p_ref, y_ref, sum_ref, ssq_ref):
    """One lane-tile of the fused 3x3 conv + incremental per-channel stats.

    w_ref:   (Cout, K)    conv weights, K = 9*Cin              (compute dtype)
    p_ref:   (K, TILE)    im2col patches for this tile         (compute dtype)
    y_ref:   (Cout, TILE) conv output tile                     (f32)
    sum_ref: (Cout, 1)    running per-channel sum              (f32, accumulator)
    ssq_ref: (Cout, 1)    running per-channel sum of squares   (f32, accumulator)
    """
    @pl.when(pl.program_id(0) == 0)
    def _():
        sum_ref[...] = jnp.zeros_like(sum_ref)
        ssq_ref[...] = jnp.zeros_like(ssq_ref)

    # Single fused matmul over K = 9*Cin (all nine taps at once); f32
    # accumulation on the MXU, result kept in registers.
    y = jnp.dot(w_ref[...], p_ref[...], preferred_element_type=jnp.float32)
    y_ref[...] = y

    # Incremental BatchNorm statistics (lane reductions ride on the XLU).
    sum_ref[...] += jnp.sum(y, axis=1, keepdims=True)
    ssq_ref[...] += jnp.sum(y * y, axis=1, keepdims=True)


def _bn_relu_kernel(y_ref, scale_ref, shift_ref, o_ref):
    """Lane-dense affine BatchNorm apply + ReLU."""
    o_ref[...] = jnp.maximum(
        y_ref[...] * scale_ref[...] + shift_ref[...], 0.0
    ).astype(o_ref.dtype)


@functools.partial(jax.jit, static_argnames=("eps", "row_tile", "compute_dtype"))
def res_stem_cifar(x_nchw, conv_w_oihw, gamma, beta, *,
                   eps=BN_EPS, row_tile=4096, compute_dtype=jnp.bfloat16):
    """x_nchw: (N, Cin, H, W); conv_w_oihw: (Cout, Cin, 3, 3); gamma/beta: (Cout,)."""
    N, Cin, H, W = x_nchw.shape
    Cout = conv_w_oihw.shape[0]
    K = 9 * Cin
    R = N * H * W

    # Lane tile (multiple of 128); pad the row axis so the grid divides evenly.
    tile = min(_round_up(int(row_tile), 128), _round_up(R, 128))
    r_pad = _round_up(R, tile)
    grid = (r_pad // tile,)

    # im2col in the XLA wrapper, channels-first: P[k, r] with k = tap*Cin + cin,
    # r = n*H*W + h*W + w.  Conv padding is folded into this step.
    xp = jnp.pad(x_nchw.astype(jnp.float32), ((0, 0), (0, 0), (1, 1), (1, 1)))
    xp = jnp.transpose(xp, (1, 0, 2, 3))                    # (Cin, N, H+2, W+2)
    taps = [xp[:, :, dy:dy + H, dx:dx + W].reshape(Cin, R)
            for dy in range(3) for dx in range(3)]
    patches = jnp.concatenate(taps, axis=0)                 # (K, R)
    patches = jnp.pad(patches, ((0, 0), (0, r_pad - R))).astype(compute_dtype)

    # OIHW -> (Cout, ky, kx, Cin) -> (Cout, K), matching the tap ordering above.
    w2 = jnp.transpose(conv_w_oihw.astype(jnp.float32), (0, 2, 3, 1))
    w2 = w2.reshape(Cout, K).astype(compute_dtype)

    # ---- Pass 1: fused conv matmul + per-channel sum / sum-of-squares. -------
    y_flat, csum, cssq = pl.pallas_call(
        _conv_stats_kernel,
        out_shape=(
            jax.ShapeDtypeStruct((Cout, r_pad), jnp.float32),
            jax.ShapeDtypeStruct((Cout, 1), jnp.float32),
            jax.ShapeDtypeStruct((Cout, 1), jnp.float32),
        ),
        grid_spec=pltpu.PrefetchScalarGridSpec(
            num_scalar_prefetch=0,
            grid=grid,
            in_specs=[
                pl.BlockSpec((Cout, K), lambda i: (0, 0)),      # weights: resident
                pl.BlockSpec((K, tile), lambda i: (0, i)),      # patch tile
            ],
            out_specs=(
                pl.BlockSpec((Cout, tile), lambda i: (0, i)),   # conv-out tile
                pl.BlockSpec((Cout, 1), lambda i: (0, 0)),      # sum accumulator
                pl.BlockSpec((Cout, 1), lambda i: (0, 0)),      # sumsq accumulator
            ),
        ),
        compiler_params=pltpu.CompilerParams(
            dimension_semantics=("arbitrary",),   # stats accumulate across grid
            vmem_limit_bytes=_VMEM_LIMIT,
        ),
    )(w2, patches)

    # ---- Tiny per-channel fold (f32): batch mean / biased var -> scale, shift.
    # Padded columns are exact zeros, so dividing by the true count R is exact.
    count = jnp.float32(R)
    mean = csum[:, 0] / count
    var = jnp.maximum(cssq[:, 0] / count - mean * mean, 0.0)
    inv = jax.lax.rsqrt(var + jnp.float32(eps))
    scale = gamma.astype(jnp.float32) * inv
    shift = beta.astype(jnp.float32) - mean * scale

    # ---- Pass 2: lane-dense BatchNorm apply + ReLU. --------------------------
    out_flat = pl.pallas_call(
        _bn_relu_kernel,
        out_shape=jax.ShapeDtypeStruct((Cout, r_pad), x_nchw.dtype),
        grid_spec=pltpu.PrefetchScalarGridSpec(
            num_scalar_prefetch=0,
            grid=grid,
            in_specs=[
                pl.BlockSpec((Cout, tile), lambda i: (0, i)),
                pl.BlockSpec((Cout, 1), lambda i: (0, 0)),
                pl.BlockSpec((Cout, 1), lambda i: (0, 0)),
            ],
            out_specs=pl.BlockSpec((Cout, tile), lambda i: (0, i)),
        ),
        compiler_params=pltpu.CompilerParams(
            dimension_semantics=("parallel",),
            vmem_limit_bytes=_VMEM_LIMIT,
        ),
    )(y_flat, scale.reshape(Cout, 1), shift.reshape(Cout, 1))

    # (Cout, N*H*W) -> (N, Cout, H, W)
    out = out_flat[:, :R].reshape(Cout, N, H, W)
    return jnp.transpose(out, (1, 0, 2, 3))


def _reference(x_nchw, conv_w_oihw, gamma, beta, eps=BN_EPS):
    y = jax.lax.conv_general_dilated(
        x_nchw.astype(jnp.float32),
        conv_w_oihw.astype(jnp.float32),
        window_strides=(1, 1),
        padding=((1, 1), (1, 1)),
        dimension_numbers=("NCHW", "OIHW", "NCHW"),
    )
    mean = jnp.mean(y, axis=(0, 2, 3), keepdims=True)
    var = jnp.mean((y - mean) ** 2, axis=(0, 2, 3), keepdims=True)
    y = (y - mean) * jax.lax.rsqrt(var + eps)
    y = y * gamma.reshape(1, -1, 1, 1) + beta.reshape(1, -1, 1, 1)
    return jnp.maximum(y, 0.0)


if __name__ == "__main__":
    key = jax.random.PRNGKey(0)
    k_x, k_w, k_g, k_b = jax.random.split(key, 4)

    N, Cin, H, W = 2, 4, 16, 16   # w_in = 4
    Cout = 8                      # w_out = 8

    x = jax.random.normal(k_x, (N, Cin, H, W), dtype=jnp.float32)
    conv_w = jax.random.normal(k_w, (Cout, Cin, 3, 3), dtype=jnp.float32) * 0.1
    gamma = jax.random.uniform(k_g, (Cout,), minval=0.5, maxval=1.5, dtype=jnp.float32)
    beta = jax.random.normal(k_b, (Cout,), dtype=jnp.float32) * 0.1

    # Check 1: f32 MXU path against the exact f32 reference.
    out_f32 = jax.block_until_ready(
        res_stem_cifar(x, conv_w, gamma, beta, compute_dtype=jnp.float32))
    ref_f32 = _reference(x, conv_w, gamma, beta)
    if not jnp.allclose(out_f32, ref_f32, atol=1e-4, rtol=1e-4):
        raise AssertionError("f32 Pallas kernel does not match reference")

    # Check 2: default bf16 MXU path with row_tile=256 (grid of 2 -> exercises
    # the cross-tile stats accumulator), against a reference fed the same
    # bf16-rounded inputs (both sides accumulate in f32).
    out_bf16 = jax.block_until_ready(
        res_stem_cifar(x, conv_w, gamma, beta, row_tile=256))
    xq = x.astype(jnp.bfloat16).astype(jnp.float32)
    wq = conv_w.astype(jnp.bfloat16).astype(jnp.float32)
    ref_bf16 = _reference(xq, wq, gamma, beta)
    if not jnp.allclose(out_bf16, ref_bf16, atol=1e-3, rtol=1e-3):
        raise AssertionError("bf16 Pallas kernel does not match reference")

    print("KERNEL_OK")
</pallas_src>

<mosaic_0001>
module attributes {stable_mosaic.version = 11 : i64} {
  func.func @_conv_stats_kernel(%arg0: i32, %arg1: memref<8x36xf32, #tpu.memory_space<vmem>>, %arg2: memref<36x512xf32, #tpu.memory_space<vmem>>, %arg3: memref<8x512xf32, #tpu.memory_space<vmem>>, %arg4: memref<8x1xf32, #tpu.memory_space<vmem>>, %arg5: memref<8x1xf32, #tpu.memory_space<vmem>>) attributes {dimension_semantics = [#tpu.dimension_semantics<arbitrary>], iteration_bounds = array<i64: 1>, scalar_prefetch = 0 : i64, scratch_operands = 0 : i64, tpu.core_type = #tpu.core_type<tc>, window_params = [{pipeline_mode = #tpu.pipeline_mode<synchronous>, transform_indices = @transform_0, window_bounds = array<i64: 8, 36>}, {transform_indices = @transform_1, window_bounds = array<i64: 36, 512>}, {transform_indices = @transform_2, window_bounds = array<i64: 8, 512>}, {pipeline_mode = #tpu.pipeline_mode<synchronous>, transform_indices = @transform_3, window_bounds = array<i64: 8, 1>}, {pipeline_mode = #tpu.pipeline_mode<synchronous>, transform_indices = @transform_4, window_bounds = array<i64: 8, 1>}]} {
    %c0_i32 = arith.constant 0 : i32
    %0 = arith.cmpi eq, %arg0, %c0_i32 : i32
    %1 = arith.extui %0 : i1 to i32
    %c0_i32_0 = arith.constant 0 : i32
    %2 = arith.cmpi ne, %1, %c0_i32_0 : i32
    scf.if %2 {
      %cst_16 = arith.constant 0.000000e+00 : f32
      %18 = vector.broadcast %cst_16 : f32 to vector<8x1xf32>
      %c0_17 = arith.constant 0 : index
      %c0_18 = arith.constant 0 : index
      %19 = vector.load %arg4[%c0_17, %c0_18] : memref<8x1xf32, #tpu.memory_space<vmem>>, vector<8x1xf32>
      tpu.vector_store %arg4[%c0_17, %c0_18], %18 {strides = array<i32>} : memref<8x1xf32, #tpu.memory_space<vmem>>, vector<8x1xf32>,
      %cst_19 = arith.constant 0.000000e+00 : f32
      %20 = vector.broadcast %cst_19 : f32 to vector<8x1xf32>
      %c0_20 = arith.constant 0 : index
      %c0_21 = arith.constant 0 : index
      %21 = vector.load %arg5[%c0_20, %c0_21] : memref<8x1xf32, #tpu.memory_space<vmem>>, vector<8x1xf32>
      tpu.vector_store %arg5[%c0_20, %c0_21], %20 {strides = array<i32>} : memref<8x1xf32, #tpu.memory_space<vmem>>, vector<8x1xf32>,
    } else {
    }
    %c0 = arith.constant 0 : index
    %c0_1 = arith.constant 0 : index
    %3 = vector.load %arg1[%c0, %c0_1] : memref<8x36xf32, #tpu.memory_space<vmem>>, vector<8x36xf32>
    %c0_2 = arith.constant 0 : index
    %c0_3 = arith.constant 0 : index
    %4 = vector.load %arg2[%c0_2, %c0_3] : memref<36x512xf32, #tpu.memory_space<vmem>>, vector<36x512xf32>
    %cst = arith.constant dense<0.000000e+00> : vector<8x512xf32>
    %5 = tpu.matmul %3, %4, %cst {dimension_numbers = #tpu.dot_dimension_numbers<[1], [0], [0], [1], [0, 0, 1, 1], [], []>} : vector<8x36xf32>, vector<36x512xf32>, vector<8x512xf32> -> vector<8x512xf32>
    %c0_4 = arith.constant 0 : index
    %c0_5 = arith.constant 0 : index
    %6 = vector.load %arg3[%c0_4, %c0_5] : memref<8x512xf32, #tpu.memory_space<vmem>>, vector<8x512xf32>
    tpu.vector_store %arg3[%c0_4, %c0_5], %5 {strides = array<i32>} : memref<8x512xf32, #tpu.memory_space<vmem>>, vector<8x512xf32>,
    %c0_6 = arith.constant 0 : index
    %c0_7 = arith.constant 0 : index
    %7 = vector.load %arg4[%c0_6, %c0_7] : memref<8x1xf32, #tpu.memory_space<vmem>>, vector<8x1xf32>
    %cst_8 = arith.constant dense<0.000000e+00> : vector<8xf32>
    %8 = vector.multi_reduction <add>, %5, %cst_8 [1] : vector<8x512xf32> to vector<8xf32>
    %9 = vector.shape_cast %8 : vector<8xf32> to vector<8x1xf32>
    %10 = arith.addf %7, %9 : vector<8x1xf32>
    %c0_9 = arith.constant 0 : index
    %c0_10 = arith.constant 0 : index
    %11 = vector.load %arg4[%c0_9, %c0_10] : memref<8x1xf32, #tpu.memory_space<vmem>>, vector<8x1xf32>
    tpu.vector_store %arg4[%c0_9, %c0_10], %10 {strides = array<i32>} : memref<8x1xf32, #tpu.memory_space<vmem>>, vector<8x1xf32>,
    %c0_11 = arith.constant 0 : index
    %c0_12 = arith.constant 0 : index
    %12 = vector.load %arg5[%c0_11, %c0_12] : memref<8x1xf32, #tpu.memory_space<vmem>>, vector<8x1xf32>
    %13 = arith.mulf %5, %5 : vector<8x512xf32>
    %cst_13 = arith.constant dense<0.000000e+00> : vector<8xf32>
    %14 = vector.multi_reduction <add>, %13, %cst_13 [1] : vector<8x512xf32> to vector<8xf32>
    %15 = vector.shape_cast %14 : vector<8xf32> to vector<8x1xf32>
    %16 = arith.addf %12, %15 : vector<8x1xf32>
    %c0_14 = arith.constant 0 : index
    %c0_15 = arith.constant 0 : index
    %17 = vector.load %arg5[%c0_14, %c0_15] : memref<8x1xf32, #tpu.memory_space<vmem>>, vector<8x1xf32>
    tpu.vector_store %arg5[%c0_14, %c0_15], %16 {strides = array<i32>} : memref<8x1xf32, #tpu.memory_space<vmem>>, vector<8x1xf32>,
    return
  }
  func.func @transform_0(%arg0: i32) -> (i32, i32) {
    %c0_i32 = arith.constant 0 : i32
    %c0_i32_0 = arith.constant 0 : i32
    %c0_i32_1 = arith.constant 0 : i32
    return %c0_i32, %c0_i32_0 : i32, i32
  }
  func.func @transform_1(%arg0: i32) -> (i32, i32) {
    %c0_i32 = arith.constant 0 : i32
    %c0_i32_0 = arith.constant 0 : i32
    return %c0_i32, %arg0 : i32, i32
  }
  func.func @transform_2(%arg0: i32) -> (i32, i32) {
    %c0_i32 = arith.constant 0 : i32
    %c0_i32_0 = arith.constant 0 : i32
    return %c0_i32, %arg0 : i32, i32
  }
  func.func @transform_3(%arg0: i32) -> (i32, i32) {
    %c0_i32 = arith.constant 0 : i32
    %c0_i32_0 = arith.constant 0 : i32
    %c0_i32_1 = arith.constant 0 : i32
    return %c0_i32, %c0_i32_0 : i32, i32
  }
  func.func @transform_4(%arg0: i32) -> (i32, i32) {
    %c0_i32 = arith.constant 0 : i32
    %c0_i32_0 = arith.constant 0 : i32
    %c0_i32_1 = arith.constant 0 : i32
    return %c0_i32, %c0_i32_0 : i32, i32
  }
}

module attributes {stable_mosaic.version = 11 : i64} {
  func.func @_bn_relu_kernel(%arg0: i32, %arg1: memref<8x512xf32, #tpu.memory_space<vmem>>, %arg2: memref<8x1xf32, #tpu.memory_space<vmem>>, %arg3: memref<8x1xf32, #tpu.memory_space<vmem>>, %arg4: memref<8x512xf32, #tpu.memory_space<vmem>>) attributes {dimension_semantics = [#tpu.dimension_semantics<parallel>], iteration_bounds = array<i64: 1>, scalar_prefetch = 0 : i64, scratch_operands = 0 : i64, tpu.core_type = #tpu.core_type<tc>, window_params = [{transform_indices = @transform_0, window_bounds = array<i64: 8, 512>}, {pipeline_mode = #tpu.pipeline_mode<synchronous>, transform_indices = @transform_1, window_bounds = array<i64: 8, 1>}, {pipeline_mode = #tpu.pipeline_mode<synchronous>, transform_indices = @transform_2, window_bounds = array<i64: 8, 1>}, {transform_indices = @transform_3, window_bounds = array<i64: 8, 512>}]} {
    %c0 = arith.constant 0 : index
    %c0_0 = arith.constant 0 : index
    %0 = vector.load %arg1[%c0, %c0_0] : memref<8x512xf32, #tpu.memory_space<vmem>>, vector<8x512xf32>
    %c0_1 = arith.constant 0 : index
    %c0_2 = arith.constant 0 : index
    %1 = vector.load %arg2[%c0_1, %c0_2] : memref<8x1xf32, #tpu.memory_space<vmem>>, vector<8x1xf32>
    %2 = vector.broadcast %1 : vector<8x1xf32> to vector<8x512xf32>
    %3 = arith.mulf %0, %2 : vector<8x512xf32>
    %c0_3 = arith.constant 0 : index
    %c0_4 = arith.constant 0 : index
    %4 = vector.load %arg3[%c0_3, %c0_4] : memref<8x1xf32, #tpu.memory_space<vmem>>, vector<8x1xf32>
    %5 = vector.broadcast %4 : vector<8x1xf32> to vector<8x512xf32>
    %6 = arith.addf %3, %5 : vector<8x512xf32>
    %cst = arith.constant 0.000000e+00 : f32
    %7 = vector.broadcast %cst : f32 to vector<8x512xf32>
    %8 = arith.maximumf %6, %7 : vector<8x512xf32>
    %c0_5 = arith.constant 0 : index
    %c0_6 = arith.constant 0 : index
    %9 = vector.load %arg4[%c0_5, %c0_6] : memref<8x512xf32, #tpu.memory_space<vmem>>, vector<8x512xf32>
    tpu.vector_store %arg4[%c0_5, %c0_6], %8 {strides = array<i32>} : memref<8x512xf32, #tpu.memory_space<vmem>>, vector<8x512xf32>,
    return
  }
  func.func @transform_0(%arg0: i32) -> (i32, i32) {
    %c0_i32 = arith.constant 0 : i32
    %c0_i32_0 = arith.constant 0 : i32
    return %c0_i32, %arg0 : i32, i32
  }
  func.func @transform_1(%arg0: i32) -> (i32, i32) {
    %c0_i32 = arith.constant 0 : i32
    %c0_i32_0 = arith.constant 0 : i32
    %c0_i32_1 = arith.constant 0 : i32
    return %c0_i32, %c0_i32_0 : i32, i32
  }
  func.func @transform_2(%arg0: i32) -> (i32, i32) {
    %c0_i32 = arith.constant 0 : i32
    %c0_i32_0 = arith.constant 0 : i32
    %c0_i32_1 = arith.constant 0 : i32
    return %c0_i32, %c0_i32_0 : i32, i32
  }
  func.func @transform_3(%arg0: i32) -> (i32, i32) {
    %c0_i32 = arith.constant 0 : i32
    %c0_i32_0 = arith.constant 0 : i32
    return %c0_i32, %arg0 : i32, i32
  }
}

</mosaic_0001>

<llo_original>
// kernel: res_stem_cifar.3
$region0: #{res_stem_cifar.3}
  #allocation0 [shape = 'u32[]', space=smem, size = 0x4, offset = 0x4, fixed_abs, tag = 'smem constant byte address 0x4 - core index']
  #allocation1 [shape = 'u32[72,128]{1,0:T(1,128)}', space=vmem, size = 0x9000, scoped, tag = 'internal scratch']
  %s0 = inlined_call_operand.vmem [shape: f32[8,512], index: 0, kind: input, shape index: {}]
  %s1 = inlined_call_operand.vmem [shape: f32[8,1], index: 1, kind: input, shape index: {}]
  %s2 = inlined_call_operand.vmem [shape: f32[8,1], index: 2, kind: input, shape index: {}]
  %s3 = inlined_call_operand.vmem [shape: f32[8,512], index: 3, kind: output, shape index: {}]
  %s4 = sld [smem:[#allocation0]]
  $region22: #{res_stem_cifar.3} parent=0
    _
  %s6 = ssub.s32 1, %s4
  %s7 = scalar_select 0, %s6, %s4
  // Predicated region
  $region2: #{res_stem_cifar.3} parent=0 // pred_check
    _
  $region3: #{res_stem_cifar.3} parent=0 // pred_check_branch
    %9 = sbr.rel (0) target = $region5
  $region4: #{res_stem_cifar.3} parent=0 // pred_region
    _
  $region5: #{res_stem_cifar.3} parent=0 // pred_fallthru
    _
  // Predicated region
  $region6: #{res_stem_cifar.3} parent=0 // pred_check
    _
  $region7: #{res_stem_cifar.3} parent=0 // pred_check_branch
    %11 = sbr.rel (0) target = $region9
  $region8: #{res_stem_cifar.3} parent=0 // pred_region
    _
  $region9: #{res_stem_cifar.3} parent=0 // pred_fallthru
    _
  // Predicated region
  $region10: #{res_stem_cifar.3} parent=0 // pred_check
    _
  $region11: #{res_stem_cifar.3} parent=0 // pred_check_branch
    %13 = sbr.rel (0) target = $region13
  $region12: #{res_stem_cifar.3} parent=0 // pred_region
    _
  $region13: #{res_stem_cifar.3} parent=0 // pred_fallthru
    _
  %v14 = vld [vmem:[%s0] sm:$0xff]
  %v15 = vld [vmem:[%s0 + $0x8] sm:$0xff]
  %v16 = vld [vmem:[%s0 + $0x10] sm:$0xff]
  %v17 = vld [vmem:[%s0 + $0x18] sm:$0xff]
  %v18 = vld [vmem:[%s1] sm:$0xff]
  %20 = vset.pattern.permute.xlu0 0
  %21 = vperm.xlu0 %20, %v18
  %v22 = vpop.permute.xlu0 %21
  %v24 = vmul.f32 %v14, %v22
  %v25 = vmul.f32 %v15, %v22
  %v26 = vmul.f32 %v16, %v22
  %v27 = vmul.f32 %v17, %v22
  %v28 = vld [vmem:[%s2] sm:$0xff]
  %30 = vset.pattern.permute.xlu0 0
  %31 = vperm.xlu0 %30, %v28
  %v32 = vpop.permute.xlu0 %31
  %v34 = vadd.f32 %v24, %v32
  %v35 = vadd.f32 %v25, %v32
  %v36 = vadd.f32 %v26, %v32
  %v37 = vadd.f32 %v27, %v32
  %v38 = vmax.f32 %v34, 0.0
  %v39 = vmax.f32 %v35, 0.0
  %v40 = vmax.f32 %v36, 0.0
  %v41 = vmax.f32 %v37, 0.0
  %42 = vst [vmem:[%s3] sm:$0xff] %v38
  %43 = vst [vmem:[%s3 + $0x8] sm:$0xff] %v39
  %44 = vst [vmem:[%s3 + $0x10] sm:$0xff] %v40
  %45 = vst [vmem:[%s3 + $0x18] sm:$0xff] %v41
  // Predicated region
  $region14: #{res_stem_cifar.3} parent=0 // pred_check
    _
  $region15: #{res_stem_cifar.3} parent=0 // pred_check_branch
    %47 = sbr.rel (0) target = $region17
  $region16: #{res_stem_cifar.3} parent=0 // pred_region
    _
  $region17: #{res_stem_cifar.3} parent=0 // pred_fallthru
    _
  // Predicated region
  $region18: #{res_stem_cifar.3} parent=0 // pred_check
    _
  $region19: #{res_stem_cifar.3} parent=0 // pred_check_branch
    %49 = sbr.rel (0) target = $region21
  $region20: #{res_stem_cifar.3} parent=0 // pred_region
    _
  $region21: #{res_stem_cifar.3} parent=0 // pred_fallthru
    _

// kernel: res_stem_cifar.2
$region0: #{res_stem_cifar.2}
  #allocation0 [shape = 'u32[]', space=smem, size = 0x4, offset = 0x4, fixed_abs, tag = 'smem constant byte address 0x4 - core index']
  #allocation1 [shape = 'u32[72,128]{1,0:T(1,128)}', space=vmem, size = 0x9000, scoped, tag = 'internal scratch']
  %s0 = inlined_call_operand.vmem [shape: f32[8,36], index: 0, kind: input, shape index: {}]
  %s1 = inlined_call_operand.vmem [shape: f32[36,512], index: 1, kind: input, shape index: {}]
  %s2 = inlined_call_operand.vmem [shape: f32[8,512], index: 2, kind: output, shape index: {0}]
  %s3 = inlined_call_operand.vmem [shape: f32[8,1], index: 3, kind: output, shape index: {1}]
  %s4 = inlined_call_operand.vmem [shape: f32[8,1], index: 4, kind: output, shape index: {2}]
  %5 = xla_tuple %s2, %s3, %s4
  %s6 = sld [smem:[#allocation0]]
  $region38: #{res_stem_cifar.2} parent=0
    _
  %s8 = ssub.s32 1, %s6
  %s9 = scalar_select 0, %s8, %s6
  // Predicated region
  $region2: #{res_stem_cifar.2} parent=0 // pred_check
    _
  $region3: #{res_stem_cifar.2} parent=0 // pred_check_branch
    %11 = sbr.rel (0) target = $region5
  $region4: #{res_stem_cifar.2} parent=0 // pred_region
    _
  $region5: #{res_stem_cifar.2} parent=0 // pred_fallthru
    _
  // Predicated region
  $region6: #{res_stem_cifar.2} parent=0 // pred_check
    _
  $region7: #{res_stem_cifar.2} parent=0 // pred_check_branch
    %13 = sbr.rel (0) target = $region9
  $region8: #{res_stem_cifar.2} parent=0 // pred_region
    _
  $region9: #{res_stem_cifar.2} parent=0 // pred_fallthru
    _
  %p14 = scmp.eq.s32.totalorder 0, 0
  // Predicated region
  $region10: #{res_stem_cifar.2} parent=0 // pred_check
    %p15 = pneg %p14
  $region11: #{res_stem_cifar.2} parent=0 // pred_check_branch
    %17 = sbr.rel (%p15) target = $region13
  $region12: #{res_stem_cifar.2} parent=0 // pred_region
    %vm18 = vcmask 7168
    %19 = vst.msk [vmem:[%s3] sm:$0xff] %vm18, 0.0
    %20 = vst.msk [vmem:[%s4] sm:$0xff] %vm18, 0.0
  $region13: #{res_stem_cifar.2} parent=0 // pred_fallthru
    _
  %v21 = vld [vmem:[%s0] sm:$0xff]
  %v22 = vld [vmem:[%s1] sm:$0xff]
  %v23 = vld [vmem:[%s1 + $0x8] sm:$0xff]
  %v24 = vld [vmem:[%s1 + $0x10] sm:$0xff]
  %v25 = vld [vmem:[%s1 + $0x18] sm:$0xff]
  %v26 = vld [vmem:[%s1 + $0x20] sm:$0xff]
  %v27 = vld [vmem:[%s1 + $0x28] sm:$0xff]
  %v28 = vld [vmem:[%s1 + $0x30] sm:$0xff]
  %v29 = vld [vmem:[%s1 + $0x38] sm:$0xff]
  %v30 = vld [vmem:[%s1 + $0x40] sm:$0xff]
  %v31 = vld [vmem:[%s1 + $0x48] sm:$0xff]
  %v32 = vld [vmem:[%s1 + $0x50] sm:$0xff]
  %v33 = vld [vmem:[%s1 + $0x58] sm:$0xff]
  %v34 = vld [vmem:[%s1 + $0x60] sm:$0xff]
  %v35 = vld [vmem:[%s1 + $0x68] sm:$0xff]
  %v36 = vld [vmem:[%s1 + $0x70] sm:$0xff]
  %v37 = vld [vmem:[%s1 + $0x78] sm:$0xff]
  %v38 = vld [vmem:[%s1 + $0x80] sm:$0xf]
  %v39 = vld [vmem:[%s1 + $0x88] sm:$0xf]
  %v40 = vld [vmem:[%s1 + $0x90] sm:$0xf]
  %v41 = vld [vmem:[%s1 + $0x98] sm:$0xf]
  %vm42 = vcmask 293888
  %v44 = vsel %vm42, %v21, 0
  %vm46 = vcmask 1043456
  %v48 = vsel %vm46, %v38, 0
  %v51 = vsel %vm46, %v39, 0
  %v54 = vsel %vm46, %v40, 0
  %v57 = vsel %vm46, %v41, 0
  %59 = vmatpush.msra.mxu0 0.0
  %60 = vmatpush.msra.mxu0 0.0
  %61 = vmatpush.msra.mxu0 0.0
  %62 = vmatpush.msra.mxu0 0.0
  %63 = vmatpush.msra.mxu0 0.0
  %64 = vmatpush.msra.mxu0 0.0
  %65 = vmatpush.msra.mxu0 0.0
  %66 = vmatpush.msra.mxu0 0.0
  %67 = vmatpush.msra.mxu0 0.0
  %68 = vmatpush.msra.mxu0 0.0
  %69 = vmatpush.msra.mxu0 0.0
  %70 = vmatpush.msra.mxu0 %v48
  %71 = vmatpush.msra.mxu0 %v34
  %72 = vmatpush.msra.mxu0 %v30
  %73 = vmatpush.msra.mxu0 %v26
  %74 = vmatpush.msra.mxu0 %v22
  %75 = vmatmul.f32.gmra.mxu0 %v44
  %v76 = vpop.f32.mrf.mxu0
  %v77 = vadd.f32 0.0, %v76
  %78 = vdwg.mxu0
  %79 = vmatpush.msra.mxu0 0.0
  %80 = vmatpush.msra.mxu0 0.0
  %81 = vmatpush.msra.mxu0 0.0
  %82 = vmatpush.msra.mxu0 0.0
  %83 = vmatpush.msra.mxu0 0.0
  %84 = vmatpush.msra.mxu0 0.0
  %85 = vmatpush.msra.mxu0 0.0
  %86 = vmatpush.msra.mxu0 0.0
  %87 = vmatpush.msra.mxu0 0.0
  %88 = vmatpush.msra.mxu0 0.0
  %89 = vmatpush.msra.mxu0 0.0
  %90 = vmatpush.msra.mxu0 %v51
  %91 = vmatpush.msra.mxu0 %v35
  %92 = vmatpush.msra.mxu0 %v31
  %93 = vmatpush.msra.mxu0 %v27
  %94 = vmatpush.msra.mxu0 %v23
  %95 = vmatmul.f32.gmra.mxu0 %v44
  %v96 = vpop.f32.mrf.mxu0
  %v97 = vadd.f32 0.0, %v96
  %98 = vdwg.mxu0
  %99 = vmatpush.msra.mxu0 0.0
  %100 = vmatpush.msra.mxu0 0.0
  %101 = vmatpush.msra.mxu0 0.0
  %102 = vmatpush.msra.mxu0 0.0
  %103 = vmatpush.msra.mxu0 0.0
  %104 = vmatpush.msra.mxu0 0.0
  %105 = vmatpush.msra.mxu0 0.0
  %106 = vmatpush.msra.mxu0 0.0
  %107 = vmatpush.msra.mxu0 0.0
  %108 = vmatpush.msra.mxu0 0.0
  %109 = vmatpush.msra.mxu0 0.0
  %110 = vmatpush.msra.mxu0 %v54
  %111 = vmatpush.msra.mxu0 %v36
  %112 = vmatpush.msra.mxu0 %v32
  %113 = vmatpush.msra.mxu0 %v28
  %114 = vmatpush.msra.mxu0 %v24
  %115 = vmatmul.f32.gmra.mxu0 %v44
  %v116 = vpop.f32.mrf.mxu0
  %v117 = vadd.f32 0.0, %v116
  %118 = vdwg.mxu0
  %119 = vmatpush.msra.mxu0 0.0
  %120 = vmatpush.msra.mxu0 0.0
  %121 = vmatpush.msra.mxu0 0.0
  %122 = vmatpush.msra.mxu0 0.0
  %123 = vmatpush.msra.mxu0 0.0
  %124 = vmatpush.msra.mxu0 0.0
  %125 = vmatpush.msra.mxu0 0.0
  %126 = vmatpush.msra.mxu0 0.0
  %127 = vmatpush.msra.mxu0 0.0
  %128 = vmatpush.msra.mxu0 0.0
  %129 = vmatpush.msra.mxu0 0.0
  %130 = vmatpush.msra.mxu0 %v57
  %131 = vmatpush.msra.mxu0 %v37
  %132 = vmatpush.msra.mxu0 %v33
  %133 = vmatpush.msra.mxu0 %v29
  %134 = vmatpush.msra.mxu0 %v25
  %135 = vmatmul.f32.gmra.mxu0 %v44
  %v136 = vpop.f32.mrf.mxu0
  %v137 = vadd.f32 0.0, %v136
  %138 = vdwg.mxu0
  %139 = vst [vmem:[%s2] sm:$0xff] %v77
  %140 = vst [vmem:[%s2 + $0x8] sm:$0xff] %v97
  %141 = vst [vmem:[%s2 + $0x10] sm:$0xff] %v117
  %142 = vst [vmem:[%s2 + $0x18] sm:$0xff] %v137
  %v143 = vld [vmem:[%s3] sm:$0xff]
  %v144 = vadd.f32 %v77, %v97
  %v145 = vadd.f32 %v144, %v117
  %v146 = vadd.f32 %v145, %v137
  %147 = vadd.xlane.f32.xlu0 %v146
  %v148 = vpop.xlane.xlu0 %147
  %v149 = vadd.f32 %v143, %v148
  %vm150 = vcmask 7168
  %151 = vst.msk [vmem:[%s3] sm:$0xff] %vm150, %v149
  %v152 = vld [vmem:[%s4] sm:$0xff]
  %v153 = vmul.f32 %v77, %v77
  %v154 = vmul.f32 %v97, %v97
  %v155 = vmul.f32 %v117, %v117
  %v156 = vmul.f32 %v137, %v137
  %v157 = vadd.f32 %v153, %v154
  %v158 = vadd.f32 %v157, %v155
  %v159 = vadd.f32 %v158, %v156
  %160 = vadd.xlane.f32.xlu0 %v159
  %v161 = vpop.xlane.xlu0 %160
  %v162 = vadd.f32 %v152, %v161
  %163 = vst.msk [vmem:[%s4] sm:$0xff] %vm150, %v162
  // Predicated region
  $region14: #{res_stem_cifar.2} parent=0 // pred_check
    _
  $region15: #{res_stem_cifar.2} parent=0 // pred_check_branch
    %165 = sbr.rel (0) target = $region17
  $region16: #{res_stem_cifar.2} parent=0 // pred_region
    _
  $region17: #{res_stem_cifar.2} parent=0 // pred_fallthru
    _
  // Predicated region
  $region18: #{res_stem_cifar.2} parent=0 // pred_check
    _
  $region19: #{res_stem_cifar.2} parent=0 // pred_check_branch
    %167 = sbr.rel (0) target = $region21
  $region20: #{res_stem_cifar.2} parent=0 // pred_region
    _
  $region21: #{res_stem_cifar.2} parent=0 // pred_fallthru
    _
  // Predicated region
  $region22: #{res_stem_cifar.2} parent=0 // pred_check
    _
  $region23: #{res_stem_cifar.2} parent=0 // pred_check_branch
    %169 = sbr.rel (0) target = $region25
  $region24: #{res_stem_cifar.2} parent=0 // pred_region
    _
  $region25: #{res_stem_cifar.2} parent=0 // pred_fallthru
    _
  // Predicated region
  $region26: #{res_stem_cifar.2} parent=0 // pred_check
    _
  $region27: #{res_stem_cifar.2} parent=0 // pred_check_branch
    %171 = sbr.rel (0) target = $region29
  $region28: #{res_stem_cifar.2} parent=0 // pred_region
    _
  $region29: #{res_stem_cifar.2} parent=0 // pred_fallthru
    _
  // Predicated region
  $region30: #{res_stem_cifar.2} parent=0 // pred_check
    _
  $region31: #{res_stem_cifar.2} parent=0 // pred_check_branch
    %173 = sbr.rel (0) target = $region33
  $region32: #{res_stem_cifar.2} parent=0 // pred_region
    _
  $region33: #{res_stem_cifar.2} parent=0 // pred_fallthru
    _
  // Predicated region
  $region34: #{res_stem_cifar.2} parent=0 // pred_check
    _
  $region35: #{res_stem_cifar.2} parent=0 // pred_check_branch
    %175 = sbr.rel (0) target = $region37
  $region36: #{res_stem_cifar.2} parent=0 // pred_region
    _
  $region37: #{res_stem_cifar.2} parent=0 // pred_fallthru
    _

</llo_original>
